<compile_context>
chip_gen: v6e
topology: v6e:2x2x1
jax: 0.10.0
libtpu: 0.0.40
codegen_flags: <defaults>
</compile_context>

<pallas_src>
import functools

import jax
import jax.numpy as jnp
from jax.experimental import pallas as pl
from jax.experimental.pallas import tpu as pltpu

C_PAD = 128                      # lane-dense padded classifier width for the MXU epilogue
OUT_W = 8                        # narrow output slab width written to HBM (cols 0..1 used)
HID_PAD_MIN = 128                # pad hidden width to at least one full lane group
VMEM_BUDGET = 40 * 1024 * 1024   # tile-sizing budget (safe on v5e/v6e/v7x with raised limit)
VMEM_LIMIT = 48 * 1024 * 1024    # explicit scoped-VMEM limit handed to Mosaic
TM_CAP = 1024                    # measured mem-bound roofline saturates ~512-1024


def _round_up(a, b):
    return (a + b - 1) // b * b


def _cdiv(a, b):
    return -(-a // b)


def _fused_forward_kernel(
    x_ref,       # [TM, P]            raw pixels (native dtype)
    w_enc_ref,   # [P, HID_PAD]       bf16
    b_enc_ref,   # [1, HID_PAD]       f32
    w_c1_ref,    # [HID_PAD, HID_PAD] bf16
    b_c1_ref,    # [1, HID_PAD]       f32
    w_cls_ref,   # [HID_PAD, C_PAD]   bf16  (cols >= C are zero)
    w_cc_ref,    # [HID_PAD, C_PAD]   bf16  (= w_c2 @ w_cls, zero-padded)
    b_out_ref,   # [1, C_PAD]         f32   (= b_c2 @ w_cls + b_cls, zero-padded)
    out_ref,     # [TM, OUT_W]        f32   log-probs in cols 0..1
):
    # --- mir.encoder : Linear + ReLU (bf16 MXU, f32 accumulate) -------------------
    xb = x_ref[...].astype(jnp.bfloat16)
    y = jnp.dot(xb, w_enc_ref[...], preferred_element_type=jnp.float32)
    y = jnp.maximum(y + b_enc_ref[...], 0.0)                       # [TM, HID_PAD]

    # --- coupler first linear + Tanh (elementwise kept in f32 for v5e) ------------
    yb = y.astype(jnp.bfloat16)
    h = jnp.dot(yb, w_c1_ref[...], preferred_element_type=jnp.float32)
    h = jnp.tanh(h + b_c1_ref[...])                                # [TM, HID_PAD]

    # --- folded (coupler-linear-2 + residual + classifier) ------------------------
    # logits = (y + tanh(h) @ w_c2 + b_c2) @ w_cls + b_cls
    logits = (
        jnp.dot(yb, w_cls_ref[...], preferred_element_type=jnp.float32)
        + jnp.dot(h.astype(jnp.bfloat16), w_cc_ref[...],
                  preferred_element_type=jnp.float32)
        + b_out_ref[...]
    )                                                              # [TM, C_PAD]

    # --- log_softmax over the 2 real classes (closed form, no XLU reduce) ---------
    l0 = logits[:, 0:1]
    l1 = logits[:, 1:2]
    m = jnp.maximum(l0, l1)
    lse = m + jnp.log(1.0 + jnp.exp(-jnp.abs(l1 - l0)))            # stable logsumexp
    out_ref[...] = (logits[:, :OUT_W] - lse).astype(out_ref.dtype)


def prepare_params(params):
    """One-time parameter prep (call once, reuse across forwards).

    Folds coupler-linear-2 through the classifier (exact: y + y1 only feeds the
    classifier), zero-pads HID -> HID_PAD and classes -> C_PAD, casts weights to bf16.
    """
    (w_enc, b_enc, w_c1, b_c1, w_c2, b_c2, w_cls, b_cls) = params
    P, HID = w_enc.shape
    C = w_cls.shape[1]
    assert C <= OUT_W <= C_PAD
    hid_pad = max(_round_up(HID, 128), HID_PAD_MIN)

    w_cc = w_c2 @ w_cls                      # [HID, C]
    b_out = b_c2 @ w_cls + b_cls             # [1, C]

    def pad2(a, rows, cols):
        return jnp.pad(a, ((0, rows - a.shape[0]), (0, cols - a.shape[1])))

    bf = jnp.bfloat16
    return dict(
        w_enc=pad2(w_enc, P, hid_pad).astype(bf),
        b_enc=pad2(b_enc, 1, hid_pad),
        w_c1=pad2(w_c1, hid_pad, hid_pad).astype(bf),
        b_c1=pad2(b_c1, 1, hid_pad),
        w_cls=pad2(w_cls, hid_pad, C_PAD).astype(bf),
        w_cc=pad2(w_cc, hid_pad, C_PAD).astype(bf),
        b_out=pad2(b_out, 1, C_PAD),
        n_classes=C,
    )


@functools.partial(jax.jit, static_argnames=("n_classes",))
def _forward(x, w_enc, b_enc, w_c1, b_c1, w_cls, w_cc, b_out, *, n_classes):
    B, N, H, W = x.shape
    M, P = B * N, H * W
    hid_pad = w_enc.shape[1]
    x_item = x.dtype.itemsize

    # ---- VMEM-budgeted, divisor-friendly M tiling --------------------------------
    weight_vmem = 2 * ((P * hid_pad + hid_pad * hid_pad + 2 * hid_pad * C_PAD) * 2
                       + (2 * hid_pad + C_PAD) * 4)   # budget resident weights at 2x
    per_row = (2 * P * x_item            # double-buffered x block
               + 2 * P                   # in-kernel bf16 copy of the x block
               + 12 * hid_pad            # y / yb / h / hb intermediates
               + 4 * C_PAD               # logits
               + 2 * OUT_W * 4 + 64)     # double-buffered out block + slack
    tm_max = (VMEM_BUDGET - weight_vmem) // per_row
    tm_max = max(8, min(TM_CAP, (tm_max // 8) * 8))
    n_tiles = _cdiv(M, tm_max)
    if M >= 16:
        n_tiles = max(n_tiles, 2)        # keep >= 2 grid steps so v7x's 2 TCs both work
    TM = _round_up(_cdiv(M, n_tiles), 8)
    M_pad = _round_up(M, TM)

    # x stays in its native dtype (no wrapper-side cast); kernel casts to bf16.
    x_flat = x.reshape(M, P)
    if M_pad != M:
        x_flat = jnp.pad(x_flat, ((0, M_pad - M), (0, 0)))
    grid = (M_pad // TM,)

    row_map = lambda i: (i, 0)       # x / out: tile over M
    const_map = lambda i: (0, 0)     # weights/biases: VMEM-resident across the grid

    operands = (x_flat, w_enc, b_enc, w_c1, b_c1, w_cls, w_cc, b_out)
    in_specs = [pl.BlockSpec((TM, P), row_map)] + [
        pl.BlockSpec(op.shape, const_map) for op in operands[1:]
    ]

    cost = pl.CostEstimate(
        flops=2 * M_pad * hid_pad * (P + hid_pad + 2 * C_PAD),
        transcendentals=M_pad * (hid_pad + 2),
        bytes_accessed=int(M_pad * P * x_item + weight_vmem // 2 + M_pad * OUT_W * 4),
    )

    out = pl.pallas_call(
        _fused_forward_kernel,
        out_shape=jax.ShapeDtypeStruct((M_pad, OUT_W), jnp.float32),
        grid_spec=pltpu.PrefetchScalarGridSpec(
            num_scalar_prefetch=0,
            grid=grid,
            in_specs=in_specs,
            out_specs=pl.BlockSpec((TM, OUT_W), row_map),
        ),
        compiler_params=pltpu.CompilerParams(
            dimension_semantics=("parallel",),
            vmem_limit_bytes=VMEM_LIMIT,
        ),
        cost_estimate=cost,
    )(*operands)

    return out[:M, :n_classes].reshape(B, N, n_classes)


def enhanced_multi_ion_readout(x, prepped):
    """x: [B, N_ions, H, W] (any numeric dtype) -> log-probs [B, N_ions, n_classes]."""
    return _forward(
        x,
        prepped["w_enc"], prepped["b_enc"],
        prepped["w_c1"], prepped["b_c1"],
        prepped["w_cls"], prepped["w_cc"], prepped["b_out"],
        n_classes=prepped["n_classes"],
    )


def init_params(key, pixels, hidden, n_classes):
    """Deterministic synthetic parameter init (PyTorch-style uniform(-1/sqrt(fan_in), .))."""
    def linear(k, fan_in, fan_out):
        kw, kb = jax.random.split(k)
        bound = 1.0 / jnp.sqrt(jnp.float32(fan_in))
        w = jax.random.uniform(kw, (fan_in, fan_out), jnp.float32, -bound, bound)
        b = jax.random.uniform(kb, (1, fan_out), jnp.float32, -bound, bound)
        return w, b

    k1, k2, k3, k4 = jax.random.split(key, 4)
    w_enc, b_enc = linear(k1, pixels, hidden)
    w_c1, b_c1 = linear(k2, hidden, hidden)
    w_c2, b_c2 = linear(k3, hidden, hidden)
    w_cls, b_cls = linear(k4, hidden, n_classes)
    return (w_enc, b_enc, w_c1, b_c1, w_c2, b_c2, w_cls, b_cls)


def _reference_forward(x, params):
    """Plain-JAX f32 reference with the ORIGINAL (unfolded) module semantics."""
    (w_enc, b_enc, w_c1, b_c1, w_c2, b_c2, w_cls, b_cls) = params
    B, N, H, W = x.shape
    y = x.reshape(B, N, H * W).astype(jnp.float32)
    y = jnp.maximum(y @ w_enc + b_enc, 0.0)
    y1 = jnp.tanh(y @ w_c1 + b_c1) @ w_c2 + b_c2
    y = y + y1
    logits = y @ w_cls + b_cls
    return jax.nn.log_softmax(logits, axis=-1)


if __name__ == "__main__":
    key = jax.random.PRNGKey(0)
    k_x, k_p = jax.random.split(key)

    # Small shapes consistent with the module: 2 shots, 4 ions, 16x16 pixel ROI.
    B, N, H, W = 2, 4, 16, 16
    HID, C = 32, 2

    x = jax.random.normal(k_x, (B, N, H, W), jnp.float32)
    params = init_params(k_p, H * W, HID, C)

    prepped = prepare_params(params)                 # one-time weight prep (hoisted)
    out = jax.block_until_ready(enhanced_multi_ion_readout(x, prepped))
    ref = _reference_forward(x, params)

    assert out.shape == (B, N, C), out.shape
    # bf16 MXU path (with folded classifier) vs f32 reference: ~1e-2-level tolerance.
    max_err = float(jnp.max(jnp.abs(out - ref)))
    assert jnp.allclose(out, ref, atol=3e-2, rtol=3e-2), f"mismatch vs reference, max_err={max_err}"

    print("KERNEL_OK")
</pallas_src>

<mosaic_0001>
module attributes {stable_mosaic.version = 11 : i64} {
  func.func @_fused_forward_kernel(%arg0: i32, %arg1: memref<8x256xf32, #tpu.memory_space<vmem>>, %arg2: memref<256x128xbf16, #tpu.memory_space<vmem>>, %arg3: memref<1x128xf32, #tpu.memory_space<vmem>>, %arg4: memref<128x128xbf16, #tpu.memory_space<vmem>>, %arg5: memref<1x128xf32, #tpu.memory_space<vmem>>, %arg6: memref<128x128xbf16, #tpu.memory_space<vmem>>, %arg7: memref<128x128xbf16, #tpu.memory_space<vmem>>, %arg8: memref<1x128xf32, #tpu.memory_space<vmem>>, %arg9: memref<8x8xf32, #tpu.memory_space<vmem>>) attributes {dimension_semantics = [#tpu.dimension_semantics<parallel>], iteration_bounds = array<i64: 1>, scalar_prefetch = 0 : i64, scratch_operands = 0 : i64, tpu.core_type = #tpu.core_type<tc>, window_params = [{transform_indices = @transform_0, window_bounds = array<i64: 8, 256>}, {pipeline_mode = #tpu.pipeline_mode<synchronous>, transform_indices = @transform_1, window_bounds = array<i64: 256, 128>}, {pipeline_mode = #tpu.pipeline_mode<synchronous>, transform_indices = @transform_2, window_bounds = array<i64: 1, 128>}, {pipeline_mode = #tpu.pipeline_mode<synchronous>, transform_indices = @transform_3, window_bounds = array<i64: 128, 128>}, {pipeline_mode = #tpu.pipeline_mode<synchronous>, transform_indices = @transform_4, window_bounds = array<i64: 1, 128>}, {pipeline_mode = #tpu.pipeline_mode<synchronous>, transform_indices = @transform_5, window_bounds = array<i64: 128, 128>}, {pipeline_mode = #tpu.pipeline_mode<synchronous>, transform_indices = @transform_6, window_bounds = array<i64: 128, 128>}, {pipeline_mode = #tpu.pipeline_mode<synchronous>, transform_indices = @transform_7, window_bounds = array<i64: 1, 128>}, {transform_indices = @transform_8, window_bounds = array<i64: 8, 8>}]} {
    %c0 = arith.constant 0 : index
    %c0_0 = arith.constant 0 : index
    %0 = vector.load %arg1[%c0, %c0_0] : memref<8x256xf32, #tpu.memory_space<vmem>>, vector<8x256xf32>
    %1 = arith.truncf %0 : vector<8x256xf32> to vector<8x256xbf16>
    %c0_1 = arith.constant 0 : index
    %c0_2 = arith.constant 0 : index
    %2 = vector.load %arg2[%c0_1, %c0_2] : memref<256x128xbf16, #tpu.memory_space<vmem>>, vector<256x128xbf16>
    %cst = arith.constant dense<0.000000e+00> : vector<8x128xf32>
    %3 = tpu.matmul %1, %2, %cst {dimension_numbers = #tpu.dot_dimension_numbers<[1], [0], [0], [1], [0, 0, 1, 1], [], []>} : vector<8x256xbf16>, vector<256x128xbf16>, vector<8x128xf32> -> vector<8x128xf32>
    %c0_3 = arith.constant 0 : index
    %c0_4 = arith.constant 0 : index
    %4 = vector.load %arg3[%c0_3, %c0_4] : memref<1x128xf32, #tpu.memory_space<vmem>>, vector<1x128xf32>
    %5 = vector.broadcast %4 : vector<1x128xf32> to vector<8x128xf32>
    %6 = arith.addf %3, %5 : vector<8x128xf32>
    %cst_5 = arith.constant 0.000000e+00 : f32
    %7 = vector.broadcast %cst_5 : f32 to vector<8x128xf32>
    %8 = arith.maximumf %6, %7 : vector<8x128xf32>
    %9 = arith.truncf %8 : vector<8x128xf32> to vector<8x128xbf16>
    %c0_6 = arith.constant 0 : index
    %c0_7 = arith.constant 0 : index
    %10 = vector.load %arg4[%c0_6, %c0_7] : memref<128x128xbf16, #tpu.memory_space<vmem>>, vector<128x128xbf16>
    %cst_8 = arith.constant dense<0.000000e+00> : vector<8x128xf32>
    %11 = tpu.matmul %9, %10, %cst_8 {dimension_numbers = #tpu.dot_dimension_numbers<[1], [0], [0], [1], [0, 0, 1, 1], [], []>} : vector<8x128xbf16>, vector<128x128xbf16>, vector<8x128xf32> -> vector<8x128xf32>
    %c0_9 = arith.constant 0 : index
    %c0_10 = arith.constant 0 : index
    %12 = vector.load %arg5[%c0_9, %c0_10] : memref<1x128xf32, #tpu.memory_space<vmem>>, vector<1x128xf32>
    %13 = vector.broadcast %12 : vector<1x128xf32> to vector<8x128xf32>
    %14 = arith.addf %11, %13 : vector<8x128xf32>
    %15 = math.tanh %14 : vector<8x128xf32>
    %c0_11 = arith.constant 0 : index
    %c0_12 = arith.constant 0 : index
    %16 = vector.load %arg6[%c0_11, %c0_12] : memref<128x128xbf16, #tpu.memory_space<vmem>>, vector<128x128xbf16>
    %cst_13 = arith.constant dense<0.000000e+00> : vector<8x128xf32>
    %17 = tpu.matmul %9, %16, %cst_13 {dimension_numbers = #tpu.dot_dimension_numbers<[1], [0], [0], [1], [0, 0, 1, 1], [], []>} : vector<8x128xbf16>, vector<128x128xbf16>, vector<8x128xf32> -> vector<8x128xf32>
    %18 = arith.truncf %15 : vector<8x128xf32> to vector<8x128xbf16>
    %c0_14 = arith.constant 0 : index
    %c0_15 = arith.constant 0 : index
    %19 = vector.load %arg7[%c0_14, %c0_15] : memref<128x128xbf16, #tpu.memory_space<vmem>>, vector<128x128xbf16>
    %cst_16 = arith.constant dense<0.000000e+00> : vector<8x128xf32>
    %20 = tpu.matmul %18, %19, %cst_16 {dimension_numbers = #tpu.dot_dimension_numbers<[1], [0], [0], [1], [0, 0, 1, 1], [], []>} : vector<8x128xbf16>, vector<128x128xbf16>, vector<8x128xf32> -> vector<8x128xf32>
    %21 = arith.addf %17, %20 : vector<8x128xf32>
    %c0_17 = arith.constant 0 : index
    %c0_18 = arith.constant 0 : index
    %22 = vector.load %arg8[%c0_17, %c0_18] : memref<1x128xf32, #tpu.memory_space<vmem>>, vector<1x128xf32>
    %23 = vector.broadcast %22 : vector<1x128xf32> to vector<8x128xf32>
    %24 = arith.addf %21, %23 : vector<8x128xf32>
    %25 = vector.extract_strided_slice %24 {offsets = [0, 0], sizes = [8, 1], strides = [1, 1]} : vector<8x128xf32> to vector<8x1xf32>
    %26 = vector.extract_strided_slice %24 {offsets = [0, 1], sizes = [8, 1], strides = [1, 1]} : vector<8x128xf32> to vector<8x1xf32>
    %27 = arith.maximumf %25, %26 : vector<8x1xf32>
    %28 = arith.subf %26, %25 : vector<8x1xf32>
    %29 = math.absf %28 : vector<8x1xf32>
    %cst_19 = arith.constant 0.000000e+00 : f32
    %30 = vector.broadcast %cst_19 : f32 to vector<8x1xf32>
    %31 = arith.subf %30, %29 : vector<8x1xf32>
    %32 = math.exp %31 : vector<8x1xf32>
    %cst_20 = arith.constant 1.000000e+00 : f32
    %33 = vector.broadcast %cst_20 : f32 to vector<8x1xf32>
    %34 = arith.addf %33, %32 : vector<8x1xf32>
    %35 = math.log %34 : vector<8x1xf32>
    %36 = arith.addf %27, %35 : vector<8x1xf32>
    %37 = vector.extract_strided_slice %24 {offsets = [0, 0], sizes = [8, 8], strides = [1, 1]} : vector<8x128xf32> to vector<8x8xf32>
    %38 = vector.broadcast %36 : vector<8x1xf32> to vector<8x8xf32>
    %39 = arith.subf %37, %38 : vector<8x8xf32>
    %c0_21 = arith.constant 0 : index
    %c0_22 = arith.constant 0 : index
    %40 = vector.load %arg9[%c0_21, %c0_22] : memref<8x8xf32, #tpu.memory_space<vmem>>, vector<8x8xf32>
    tpu.vector_store %arg9[%c0_21, %c0_22], %39 {strides = array<i32>} : memref<8x8xf32, #tpu.memory_space<vmem>>, vector<8x8xf32>,
    return
  }
  func.func @transform_0(%arg0: i32) -> (i32, i32) {
    %c0_i32 = arith.constant 0 : i32
    %c0_i32_0 = arith.constant 0 : i32
    return %arg0, %c0_i32 : i32, i32
  }
  func.func @transform_1(%arg0: i32) -> (i32, i32) {
    %c0_i32 = arith.constant 0 : i32
    %c0_i32_0 = arith.constant 0 : i32
    %c0_i32_1 = arith.constant 0 : i32
    return %c0_i32, %c0_i32_0 : i32, i32
  }
  func.func @transform_2(%arg0: i32) -> (i32, i32) {
    %c0_i32 = arith.constant 0 : i32
    %c0_i32_0 = arith.constant 0 : i32
    %c0_i32_1 = arith.constant 0 : i32
    return %c0_i32, %c0_i32_0 : i32, i32
  }
  func.func @transform_3(%arg0: i32) -> (i32, i32) {
    %c0_i32 = arith.constant 0 : i32
    %c0_i32_0 = arith.constant 0 : i32
    %c0_i32_1 = arith.constant 0 : i32
    return %c0_i32, %c0_i32_0 : i32, i32
  }
  func.func @transform_4(%arg0: i32) -> (i32, i32) {
    %c0_i32 = arith.constant 0 : i32
    %c0_i32_0 = arith.constant 0 : i32
    %c0_i32_1 = arith.constant 0 : i32
    return %c0_i32, %c0_i32_0 : i32, i32
  }
  func.func @transform_5(%arg0: i32) -> (i32, i32) {
    %c0_i32 = arith.constant 0 : i32
    %c0_i32_0 = arith.constant 0 : i32
    %c0_i32_1 = arith.constant 0 : i32
    return %c0_i32, %c0_i32_0 : i32, i32
  }
  func.func @transform_6(%arg0: i32) -> (i32, i32) {
    %c0_i32 = arith.constant 0 : i32
    %c0_i32_0 = arith.constant 0 : i32
    %c0_i32_1 = arith.constant 0 : i32
    return %c0_i32, %c0_i32_0 : i32, i32
  }
  func.func @transform_7(%arg0: i32) -> (i32, i32) {
    %c0_i32 = arith.constant 0 : i32
    %c0_i32_0 = arith.constant 0 : i32
    %c0_i32_1 = arith.constant 0 : i32
    return %c0_i32, %c0_i32_0 : i32, i32
  }
  func.func @transform_8(%arg0: i32) -> (i32, i32) {
    %c0_i32 = arith.constant 0 : i32
    %c0_i32_0 = arith.constant 0 : i32
    return %arg0, %c0_i32 : i32, i32
  }
}

</mosaic_0001>

<llo_original>
// kernel: _forward.1
$region0: #{_forward.1}
  #allocation0 [shape = 'u32[]', space=smem, size = 0x4, offset = 0x4, fixed_abs, tag = 'smem constant byte address 0x4 - core index']
  #allocation1 [shape = 'u32[144,128]{1,0:T(1,128)}', space=vmem, size = 0x12000, scoped, tag = 'internal scratch']
  %s0 = inlined_call_operand.vmem [shape: f32[8,256], index: 0, kind: input, shape index: {}]
  %s1 = inlined_call_operand.vmem [shape: bf16[256,128], index: 1, kind: input, shape index: {}]
  %s2 = inlined_call_operand.vmem [shape: f32[1,128], index: 2, kind: input, shape index: {}]
  %s3 = inlined_call_operand.hbm [shape: bf16[128,128], index: 3, kind: input, shape index: {}]
  %s4 = inlined_call_operand.vmem [shape: f32[1,128], index: 4, kind: input, shape index: {}]
  %s5 = inlined_call_operand.hbm [shape: bf16[128,128], index: 5, kind: input, shape index: {}]
  %s6 = inlined_call_operand.hbm [shape: bf16[128,128], index: 6, kind: input, shape index: {}]
  %s7 = inlined_call_operand.vmem [shape: f32[1,128], index: 7, kind: input, shape index: {}]
  %s8 = inlined_call_operand.vmem [shape: f32[8,8], index: 8, kind: output, shape index: {}]
  %s9 = sld [smem:[#allocation0]]
  $region54: #{_forward.1} parent=0
    _
  %s11 = ssub.s32 1, %s9
  %s12 = scalar_select 0, %s11, %s9
  $region1: #{_forward.1} parent=0
    #allocation2 [shape = 'u8[32768]{0}', space=vmem, size = 0x8000, scoped, tag = 'input window, operand 3, single buffered']
    #allocation3 [shape = 's32[1]{0}', space=sflag, size = 0x4, scoped, tag = 'scoped memory for _forward.1']
    #allocation4 [shape = 'u8[32768]{0}', space=vmem, size = 0x8000, scoped, tag = 'input window, operand 5, single buffered']
    #allocation5 [shape = 's32[1]{0}', space=sflag, size = 0x4, scoped, tag = 'scoped memory for _forward.1']
    #allocation6 [shape = 'u8[32768]{0}', space=vmem, size = 0x8000, scoped, tag = 'input window, operand 6, single buffered']
    %13 = vsyncpa [#allocation3], 0
    %14 = vsyncpa [#allocation5], 0
    // Predicated region
    $region2: #{_forward.1} parent=1 // pred_check
      _
    $region3: #{_forward.1} parent=1 // pred_check_branch
      %16 = sbr.rel (0) target = $region5
    $region4: #{_forward.1} parent=1 // pred_region
      _
    $region5: #{_forward.1} parent=1 // pred_fallthru
      _
    // Predicated region
    $region6: #{_forward.1} parent=1 // pred_check
      _
    $region7: #{_forward.1} parent=1 // pred_check_branch
      %18 = sbr.rel (0) target = $region9
    $region8: #{_forward.1} parent=1 // pred_region
      _
    $region9: #{_forward.1} parent=1 // pred_fallthru
      _
    // Predicated region
    $region10: #{_forward.1} parent=1 // pred_check
      _
    $region11: #{_forward.1} parent=1 // pred_check_branch
      %20 = sbr.rel (0) target = $region13
    $region12: #{_forward.1} parent=1 // pred_region
      _
    $region13: #{_forward.1} parent=1 // pred_fallthru
      _
    // Predicated region
    $region14: #{_forward.1} parent=1 // pred_check
      _
    $region15: #{_forward.1} parent=1 // pred_check_branch
      %22 = sbr.rel (0) target = $region17
    $region16: #{_forward.1} parent=1 // pred_region
      %s24 = ssub.s32 1024, 1024
      %25 = vsyncadd [#allocation3], %s24
      %s26 = sshll.u32 [#allocation2], 4
      %s27 = int_to_ptr.vmem [resolvable:$true] %s26
      %32 = dma.hbm_to_vmem [thread:$0]  %s3, 1024, %s27, [#allocation3], 64, 64, 4
    $region17: #{_forward.1} parent=1 // pred_fallthru
      _
    // Predicated region
    $region18: #{_forward.1} parent=1 // pred_check
      _
    $region19: #{_forward.1} parent=1 // pred_check_branch
      %34 = sbr.rel (0) target = $region21
    $region20: #{_forward.1} parent=1 // pred_region
      _
    $region21: #{_forward.1} parent=1 // pred_fallthru
      _
    // Predicated region
    $region22: #{_forward.1} parent=1 // pred_check
      _
    $region23: #{_forward.1} parent=1 // pred_check_branch
      %36 = sbr.rel (0) target = $region25
    $region24: #{_forward.1} parent=1 // pred_region
      %s38 = ssub.s32 1024, 1024
      %39 = vsyncadd [#allocation5], %s38
      %s40 = sshll.u32 [#allocation4], 4
      %s41 = int_to_ptr.vmem [resolvable:$true] %s40
      %46 = dma.hbm_to_vmem [thread:$0]  %s5, 1024, %s41, [#allocation5], 64, 64, 4
    $region25: #{_forward.1} parent=1 // pred_fallthru
      _
    // Predicated region
    $region26: #{_forward.1} parent=1 // pred_check
      _
    $region27: #{_forward.1} parent=1 // pred_check_branch
      %48 = sbr.rel (0) target = $region29
    $region28: #{_forward.1} parent=1 // pred_region
      %s50 = ssub.s32 1024, 1024
      %51 = vsyncadd [#allocation5], %s50
      %s52 = sshll.u32 [#allocation6], 4
      %s53 = int_to_ptr.vmem [resolvable:$true] %s52
      %58 = dma.hbm_to_vmem [thread:$0]  %s6, 1024, %s53, [#allocation5], 64, 64, 4
    $region29: #{_forward.1} parent=1 // pred_fallthru
      _
    // Predicated region
    $region30: #{_forward.1} parent=1 // pred_check
      _
    $region31: #{_forward.1} parent=1 // pred_check_branch
      %60 = sbr.rel (0) target = $region33
    $region32: #{_forward.1} parent=1 // pred_region
      _
    $region33: #{_forward.1} parent=1 // pred_fallthru
      _
    // Predicated region
    $region34: #{_forward.1} parent=1 // pred_check
      _
    $region35: #{_forward.1} parent=1 // pred_check_branch
      %62 = sbr.rel (0) target = $region37
    $region36: #{_forward.1} parent=1 // pred_region
      %63 = dma.done [#allocation3], 1024
    $region37: #{_forward.1} parent=1 // pred_fallthru
      _
    // Predicated region
    $region38: #{_forward.1} parent=1 // pred_check
      _
    $region39: #{_forward.1} parent=1 // pred_check_branch
      %65 = sbr.rel (0) target = $region41
    $region40: #{_forward.1} parent=1 // pred_region
      %66 = dma.done [#allocation5], 1024
    $region41: #{_forward.1} parent=1 // pred_fallthru
      _
    // Predicated region
    $region42: #{_forward.1} parent=1 // pred_check
      _
    $region43: #{_forward.1} parent=1 // pred_check_branch
      %68 = sbr.rel (0) target = $region45
    $region44: #{_forward.1} parent=1 // pred_region
      %69 = dma.done [#allocation5], 1024
    $region45: #{_forward.1} parent=1 // pred_fallthru
      _
    %v71 = vld [vmem:[%s0] sm:$0xff]
    %v72 = vld [vmem:[%s0 + $0x8] sm:$0xff]
    %v73 = vpack.c.bf16 %v71, %v71
    %v74 = vpack.c.bf16 %v72, %v72
    %v75 = vld [vmem:[%s1] sm:$0xf]
    %v76 = vld [vmem:[%s1 + $0x4] sm:$0xf]
    %v77 = vld [vmem:[%s1 + $0x8] sm:$0xf]
    %v78 = vld [vmem:[%s1 + $0xc] sm:$0xf]
    %v79 = vld [vmem:[%s1 + $0x10] sm:$0xf]
    %v80 = vld [vmem:[%s1 + $0x14] sm:$0xf]
    %v81 = vld [vmem:[%s1 + $0x18] sm:$0xf]
    %v82 = vld [vmem:[%s1 + $0x1c] sm:$0xf]
    %v83 = vld [vmem:[%s1 + $0x20] sm:$0xf]
    %v84 = vld [vmem:[%s1 + $0x24] sm:$0xf]
    %v85 = vld [vmem:[%s1 + $0x28] sm:$0xf]
    %v86 = vld [vmem:[%s1 + $0x2c] sm:$0xf]
    %v87 = vld [vmem:[%s1 + $0x30] sm:$0xf]
    %v88 = vld [vmem:[%s1 + $0x34] sm:$0xf]
    %v89 = vld [vmem:[%s1 + $0x38] sm:$0xf]
    %v90 = vld [vmem:[%s1 + $0x3c] sm:$0xf]
    %v91 = vld [vmem:[%s1 + $0x40] sm:$0xf]
    %v92 = vld [vmem:[%s1 + $0x44] sm:$0xf]
    %v93 = vld [vmem:[%s1 + $0x48] sm:$0xf]
    %v94 = vld [vmem:[%s1 + $0x4c] sm:$0xf]
    %v95 = vld [vmem:[%s1 + $0x50] sm:$0xf]
    %v96 = vld [vmem:[%s1 + $0x54] sm:$0xf]
    %v97 = vld [vmem:[%s1 + $0x58] sm:$0xf]
    %v98 = vld [vmem:[%s1 + $0x5c] sm:$0xf]
    %v99 = vld [vmem:[%s1 + $0x60] sm:$0xf]
    %v100 = vld [vmem:[%s1 + $0x64] sm:$0xf]
    %v101 = vld [vmem:[%s1 + $0x68] sm:$0xf]
    %v102 = vld [vmem:[%s1 + $0x6c] sm:$0xf]
    %v103 = vld [vmem:[%s1 + $0x70] sm:$0xf]
    %v104 = vld [vmem:[%s1 + $0x74] sm:$0xf]
    %v105 = vld [vmem:[%s1 + $0x78] sm:$0xf]
    %v106 = vld [vmem:[%s1 + $0x7c] sm:$0xf]
    %v107 = vld [vmem:[%s2] sm:$0x1]
    %v109 = vlaneseq
    %v110 = vshrl.u32 %v109, 7
    %v111 = vsub.s32 0, %v110
    %v112 = vrot.slane %v107, %v111
    %v146 = vunpack.c.l.b16 %v75
    %v147 = vunpack.c.l.b16 %v76
    %v148 = vunpack.c.l.b16 %v77
    %v149 = vunpack.c.l.b16 %v78
    %v150 = vunpack.c.l.b16 %v79
    %v151 = vunpack.c.l.b16 %v80
    %v152 = vunpack.c.l.b16 %v81
    %v153 = vunpack.c.l.b16 %v82
    %v154 = vunpack.c.l.b16 %v83
    %v155 = vunpack.c.l.b16 %v84
    %v156 = vunpack.c.l.b16 %v85
    %v157 = vunpack.c.l.b16 %v86
    %v158 = vunpack.c.l.b16 %v87
    %v159 = vunpack.c.l.b16 %v88
    %v160 = vunpack.c.l.b16 %v89
    %v161 = vunpack.c.l.b16 %v90
    %v162 = vunpack.c.l.b16 %v91
    %v163 = vunpack.c.l.b16 %v92
    %v164 = vunpack.c.l.b16 %v93
    %v165 = vunpack.c.l.b16 %v94
    %v166 = vunpack.c.l.b16 %v95
    %v167 = vunpack.c.l.b16 %v96
    %v168 = vunpack.c.l.b16 %v97
    %v169 = vunpack.c.l.b16 %v98
    %v170 = vunpack.c.l.b16 %v99
    %v171 = vunpack.c.l.b16 %v100
    %v172 = vunpack.c.l.b16 %v101
    %v173 = vunpack.c.l.b16 %v102
    %v174 = vunpack.c.l.b16 %v103
    %v175 = vunpack.c.l.b16 %v104
    %v176 = vunpack.c.l.b16 %v105
    %v177 = vunpack.c.l.b16 %v106
    %v178 = vpack.c.b16 %v147, %v146
    %v179 = vpack.c.b16 %v149, %v148
    %v180 = vpack.c.b16 %v151, %v150
    %v181 = vpack.c.b16 %v153, %v152
    %v182 = vpack.c.b16 %v155, %v154
    %v183 = vpack.c.b16 %v157, %v156
    %v184 = vpack.c.b16 %v159, %v158
    %v185 = vpack.c.b16 %v161, %v160
    %v186 = vpack.c.b16 %v163, %v162
    %v187 = vpack.c.b16 %v165, %v164
    %v188 = vpack.c.b16 %v167, %v166
    %v189 = vpack.c.b16 %v169, %v168
    %v190 = vpack.c.b16 %v171, %v170
    %v191 = vpack.c.b16 %v173, %v172
    %v192 = vpack.c.b16 %v175, %v174
    %v193 = vpack.c.b16 %v177, %v176
    %210 = vmatprep.subr.bf16.mxu0 0
    %211 = vmatpush1.bf16.msra.mxu0 %v185
    %212 = vmatprep.subr.bf16.mxu0 0
    %213 = vmatpush1.bf16.msra.mxu0 %v184
    %214 = vmatprep.subr.bf16.mxu0 0
    %215 = vmatpush1.bf16.msra.mxu0 %v183
    %216 = vmatprep.subr.bf16.mxu0 0
    %217 = vmatpush1.bf16.msra.mxu0 %v182
    %218 = vmatprep.subr.bf16.mxu0 0
    %219 = vmatpush1.bf16.msra.mxu0 %v181
    %220 = vmatprep.subr.bf16.mxu0 0
    %221 = vmatpush1.bf16.msra.mxu0 %v180
    %222 = vmatprep.subr.bf16.mxu0 0
    %223 = vmatpush1.bf16.msra.mxu0 %v179
    %224 = vmatprep.subr.bf16.mxu0 0
    %225 = vmatpush1.bf16.msra.mxu0 %v178
    %226 = vmatprep.subr.bf16.mxu0 0
    %227 = vmatpush2.bf16.msra.mxu0 %v193
    %228 = vmatprep.subr.bf16.mxu0 0
    %229 = vmatpush2.bf16.msra.mxu0 %v192
    %230 = vmatprep.subr.bf16.mxu0 0
    %231 = vmatpush2.bf16.msra.mxu0 %v191
    %232 = vmatprep.subr.bf16.mxu0 0
    %233 = vmatpush2.bf16.msra.mxu0 %v190
    %234 = vmatprep.subr.bf16.mxu0 0
    %235 = vmatpush2.bf16.msra.mxu0 %v189
    %236 = vmatprep.subr.bf16.mxu0 0
    %237 = vmatpush2.bf16.msra.mxu0 %v188
    %238 = vmatprep.subr.bf16.mxu0 0
    %239 = vmatpush2.bf16.msra.mxu0 %v187
    %240 = vmatprep.subr.bf16.mxu0 0
    %241 = vmatpush2.bf16.msra.mxu0 %v186
    %242 = vmatprep.mubr.bf16.mxu0 %v74
    %243 = vmatmul.mubr.bf16.gmra.mxu0 %v73
    %v244 = vpop.f32.mrf.mxu0
    %v245 = vadd.f32 %v112, %v244
    %v246 = vpop.f32.mrf.mxu0
    %v247 = vpop.f32.mrf.mxu0
    %v248 = vpop.f32.mrf.mxu0
    %249 = vdwg.mxu0
    %v250 = vmax.f32 %v245, 0.0
    %v251 = vpack.c.bf16 %v250, %v250
    %v252 = vld [vmem:[#allocation2] sm:$0xf]
    %v253 = vld [vmem:[#allocation2 + $0x4] sm:$0xf]
    %v254 = vld [vmem:[#allocation2 + $0x8] sm:$0xf]
    %v255 = vld [vmem:[#allocation2 + $0xc] sm:$0xf]
    %v256 = vld [vmem:[#allocation2 + $0x10] sm:$0xf]
    %v257 = vld [vmem:[#allocation2 + $0x14] sm:$0xf]
    %v258 = vld [vmem:[#allocation2 + $0x18] sm:$0xf]
    %v259 = vld [vmem:[#allocation2 + $0x1c] sm:$0xf]
    %v260 = vld [vmem:[#allocation2 + $0x20] sm:$0xf]
    %v261 = vld [vmem:[#allocation2 + $0x24] sm:$0xf]
    %v262 = vld [vmem:[#allocation2 + $0x28] sm:$0xf]
    %v263 = vld [vmem:[#allocation2 + $0x2c] sm:$0xf]
    %v264 = vld [vmem:[#allocation2 + $0x30] sm:$0xf]
    %v265 = vld [vmem:[#allocation2 + $0x34] sm:$0xf]
    %v266 = vld [vmem:[#allocation2 + $0x38] sm:$0xf]
    %v267 = vld [vmem:[#allocation2 + $0x3c] sm:$0xf]
    %v268 = vld [vmem:[%s4] sm:$0x1]
    %v270 = vlaneseq
    %v271 = vshrl.u32 %v270, 7
    %v272 = vsub.s32 0, %v271
    %v273 = vrot.slane %v268, %v272
    %v291 = vunpack.c.l.b16 %v252
    %v292 = vunpack.c.l.b16 %v253
    %v293 = vunpack.c.l.b16 %v254
    %v294 = vunpack.c.l.b16 %v255
    %v295 = vunpack.c.l.b16 %v256
    %v296 = vunpack.c.l.b16 %v257
    %v297 = vunpack.c.l.b16 %v258
    %v298 = vunpack.c.l.b16 %v259
    %v299 = vunpack.c.l.b16 %v260
    %v300 = vunpack.c.l.b16 %v261
    %v301 = vunpack.c.l.b16 %v262
    %v302 = vunpack.c.l.b16 %v263
    %v303 = vunpack.c.l.b16 %v264
    %v304 = vunpack.c.l.b16 %v265
    %v305 = vunpack.c.l.b16 %v266
    %v306 = vunpack.c.l.b16 %v267
    %v307 = vpack.c.b16 %v292, %v291
    %v308 = vpack.c.b16 %v294, %v293
    %v309 = vpack.c.b16 %v296, %v295
    %v310 = vpack.c.b16 %v298, %v297
    %v311 = vpack.c.b16 %v300, %v299
    %v312 = vpack.c.b16 %v302, %v301
    %v313 = vpack.c.b16 %v304, %v303
    %v314 = vpack.c.b16 %v306, %v305
    %323 = vmatprep.subr.bf16.mxu0 0
    %324 = vmatpush1.bf16.msra.mxu0 %v314
    %325 = vmatprep.subr.bf16.mxu0 0
    %326 = vmatpush1.bf16.msra.mxu0 %v313
    %327 = vmatprep.subr.bf16.mxu0 0
    %328 = vmatpush1.bf16.msra.mxu0 %v312
    %329 = vmatprep.subr.bf16.mxu0 0
    %330 = vmatpush1.bf16.msra.mxu0 %v311
    %331 = vmatprep.subr.bf16.mxu0 0
    %332 = vmatpush1.bf16.msra.mxu0 %v310
    %333 = vmatprep.subr.bf16.mxu0 0
    %334 = vmatpush1.bf16.msra.mxu0 %v309
    %335 = vmatprep.subr.bf16.mxu0 0
    %336 = vmatpush1.bf16.msra.mxu0 %v308
    %337 = vmatprep.subr.bf16.mxu0 0
    %338 = vmatpush1.bf16.msra.mxu0 %v307
    %339 = vmatprep.subr.bf16.mxu0 0
    %340 = vmatpush2.bf16.msra.mxu0 0
    %341 = vmatprep.subr.bf16.mxu0 0
    %342 = vmatpush2.bf16.msra.mxu0 0
    %343 = vmatprep.subr.bf16.mxu0 0
    %344 = vmatpush2.bf16.msra.mxu0 0
    %345 = vmatprep.subr.bf16.mxu0 0
    %346 = vmatpush2.bf16.msra.mxu0 0
    %347 = vmatprep.subr.bf16.mxu0 0
    %348 = vmatpush2.bf16.msra.mxu0 0
    %349 = vmatprep.subr.bf16.mxu0 0
    %350 = vmatpush2.bf16.msra.mxu0 0
    %351 = vmatprep.subr.bf16.mxu0 0
    %352 = vmatpush2.bf16.msra.mxu0 0
    %353 = vmatprep.subr.bf16.mxu0 0
    %354 = vmatpush2.bf16.msra.mxu0 0
    %355 = vmatprep.mubr.bf16.mxu0 0
    %356 = vmatmul.mubr.bf16.gmra.mxu0 %v251
    %v357 = vpop.f32.mrf.mxu0
    %v358 = vadd.f32 %v273, %v357
    %v359 = vpop.f32.mrf.mxu0
    %v360 = vpop.f32.mrf.mxu0
    %v361 = vpop.f32.mrf.mxu0
    %362 = vdwg.mxu0
    %v363 = vtanh.pop %v358
    %v364 = vld [vmem:[#allocation4] sm:$0xf]
    %v365 = vld [vmem:[#allocation4 + $0x4] sm:$0xf]
    %v366 = vld [vmem:[#allocation4 + $0x8] sm:$0xf]
    %v367 = vld [vmem:[#allocation4 + $0xc] sm:$0xf]
    %v368 = vld [vmem:[#allocation4 + $0x10] sm:$0xf]
    %v369 = vld [vmem:[#allocation4 + $0x14] sm:$0xf]
    %v370 = vld [vmem:[#allocation4 + $0x18] sm:$0xf]
    %v371 = vld [vmem:[#allocation4 + $0x1c] sm:$0xf]
    %v372 = vld [vmem:[#allocation4 + $0x20] sm:$0xf]
    %v373 = vld [vmem:[#allocation4 + $0x24] sm:$0xf]
    %v374 = vld [vmem:[#allocation4 + $0x28] sm:$0xf]
    %v375 = vld [vmem:[#allocation4 + $0x2c] sm:$0xf]
    %v376 = vld [vmem:[#allocation4 + $0x30] sm:$0xf]
    %v377 = vld [vmem:[#allocation4 + $0x34] sm:$0xf]
    %v378 = vld [vmem:[#allocation4 + $0x38] sm:$0xf]
    %v379 = vld [vmem:[#allocation4 + $0x3c] sm:$0xf]
    %v380 = vpack.c.bf16 %v363, %v363
    %v381 = vld [vmem:[#allocation6] sm:$0xf]
    %v382 = vld [vmem:[#allocation6 + $0x4] sm:$0xf]
    %v383 = vld [vmem:[#allocation6 + $0x8] sm:$0xf]
    %v384 = vld [vmem:[#allocation6 + $0xc] sm:$0xf]
    %v385 = vld [vmem:[#allocation6 + $0x10] sm:$0xf]
    %v386 = vld [vmem:[#allocation6 + $0x14] sm:$0xf]
    %v387 = vld [vmem:[#allocation6 + $0x18] sm:$0xf]
    %v388 = vld [vmem:[#allocation6 + $0x1c] sm:$0xf]
    %v389 = vld [vmem:[#allocation6 + $0x20] sm:$0xf]
    %v390 = vld [vmem:[#allocation6 + $0x24] sm:$0xf]
    %v391 = vld [vmem:[#allocation6 + $0x28] sm:$0xf]
    %v392 = vld [vmem:[#allocation6 + $0x2c] sm:$0xf]
    %v393 = vld [vmem:[#allocation6 + $0x30] sm:$0xf]
    %v394 = vld [vmem:[#allocation6 + $0x34] sm:$0xf]
    %v395 = vld [vmem:[#allocation6 + $0x38] sm:$0xf]
    %v396 = vld [vmem:[#allocation6 + $0x3c] sm:$0xf]
    %v413 = vunpack.c.l.b16 %v381
    %v414 = vunpack.c.l.b16 %v382
    %v415 = vunpack.c.l.b16 %v383
    %v416 = vunpack.c.l.b16 %v384
    %v417 = vunpack.c.l.b16 %v385
    %v418 = vunpack.c.l.b16 %v386
    %v419 = vunpack.c.l.b16 %v387
    %v420 = vunpack.c.l.b16 %v388
    %v421 = vunpack.c.l.b16 %v389
    %v422 = vunpack.c.l.b16 %v390
    %v423 = vunpack.c.l.b16 %v391
    %v424 = vunpack.c.l.b16 %v392
    %v425 = vunpack.c.l.b16 %v393
    %v426 = vunpack.c.l.b16 %v394
    %v427 = vunpack.c.l.b16 %v395
    %v428 = vunpack.c.l.b16 %v396
    %v429 = vpack.c.b16 %v414, %v413
    %v430 = vpack.c.b16 %v416, %v415
    %v431 = vpack.c.b16 %v418, %v417
    %v432 = vpack.c.b16 %v420, %v419
    %v433 = vpack.c.b16 %v422, %v421
    %v434 = vpack.c.b16 %v424, %v423
    %v435 = vpack.c.b16 %v426, %v425
    %v436 = vpack.c.b16 %v428, %v427
    %445 = vmatprep.subr.bf16.mxu0 0
    %446 = vmatpush1.bf16.msra.mxu0 %v436
    %447 = vmatprep.subr.bf16.mxu0 0
    %448 = vmatpush1.bf16.msra.mxu0 %v435
    %449 = vmatprep.subr.bf16.mxu0 0
    %450 = vmatpush1.bf16.msra.mxu0 %v434
    %451 = vmatprep.subr.bf16.mxu0 0
    %452 = vmatpush1.bf16.msra.mxu0 %v433
    %453 = vmatprep.subr.bf16.mxu0 0
    %454 = vmatpush1.bf16.msra.mxu0 %v432
    %455 = vmatprep.subr.bf16.mxu0 0
    %456 = vmatpush1.bf16.msra.mxu0 %v431
    %457 = vmatprep.subr.bf16.mxu0 0
    %458 = vmatpush1.bf16.msra.mxu0 %v430
    %459 = vmatprep.subr.bf16.mxu0 0
    %460 = vmatpush1.bf16.msra.mxu0 %v429
    %461 = vmatprep.subr.bf16.mxu0 0
    %462 = vmatpush2.bf16.msra.mxu0 0
    %463 = vmatprep.subr.bf16.mxu0 0
    %464 = vmatpush2.bf16.msra.mxu0 0
    %465 = vmatprep.subr.bf16.mxu0 0
    %466 = vmatpush2.bf16.msra.mxu0 0
    %467 = vmatprep.subr.bf16.mxu0 0
    %468 = vmatpush2.bf16.msra.mxu0 0
    %469 = vmatprep.subr.bf16.mxu0 0
    %470 = vmatpush2.bf16.msra.mxu0 0
    %471 = vmatprep.subr.bf16.mxu0 0
    %472 = vmatpush2.bf16.msra.mxu0 0
    %473 = vmatprep.subr.bf16.mxu0 0
    %474 = vmatpush2.bf16.msra.mxu0 0
    %475 = vmatprep.subr.bf16.mxu0 0
    %476 = vmatpush2.bf16.msra.mxu0 0
    %477 = vmatprep.mubr.bf16.mxu0 0
    %478 = vmatmul.mubr.bf16.gmra.mxu0 %v380
    %v479 = vpop.f32.mrf.mxu0
    %v480 = vadd.f32 0.0, %v479
    %v481 = vpop.f32.mrf.mxu0
    %v482 = vpop.f32.mrf.mxu0
    %v483 = vpop.f32.mrf.mxu0
    %484 = vdwg.mxu0
    %v501 = vunpack.c.l.b16 %v364
    %v502 = vunpack.c.l.b16 %v365
    %v503 = vunpack.c.l.b16 %v366
    %v504 = vunpack.c.l.b16 %v367
    %v505 = vunpack.c.l.b16 %v368
    %v506 = vunpack.c.l.b16 %v369
    %v507 = vunpack.c.l.b16 %v370
    %v508 = vunpack.c.l.b16 %v371
    %v509 = vunpack.c.l.b16 %v372
    %v510 = vunpack.c.l.b16 %v373
    %v511 = vunpack.c.l.b16 %v374
    %v512 = vunpack.c.l.b16 %v375
    %v513 = vunpack.c.l.b16 %v376
    %v514 = vunpack.c.l.b16 %v377
    %v515 = vunpack.c.l.b16 %v378
    %v516 = vunpack.c.l.b16 %v379
    %v517 = vpack.c.b16 %v502, %v501
    %v518 = vpack.c.b16 %v504, %v503
    %v519 = vpack.c.b16 %v506, %v505
    %v520 = vpack.c.b16 %v508, %v507
    %v521 = vpack.c.b16 %v510, %v509
    %v522 = vpack.c.b16 %v512, %v511
    %v523 = vpack.c.b16 %v514, %v513
    %v524 = vpack.c.b16 %v516, %v515
    %533 = vmatprep.subr.bf16.mxu0 0
    %534 = vmatpush1.bf16.msra.mxu0 %v524
    %535 = vmatprep.subr.bf16.mxu0 0
    %536 = vmatpush1.bf16.msra.mxu0 %v523
    %537 = vmatprep.subr.bf16.mxu0 0
    %538 = vmatpush1.bf16.msra.mxu0 %v522
    %539 = vmatprep.subr.bf16.mxu0 0
    %540 = vmatpush1.bf16.msra.mxu0 %v521
    %541 = vmatprep.subr.bf16.mxu0 0
    %542 = vmatpush1.bf16.msra.mxu0 %v520
    %543 = vmatprep.subr.bf16.mxu0 0
    %544 = vmatpush1.bf16.msra.mxu0 %v519
    %545 = vmatprep.subr.bf16.mxu0 0
    %546 = vmatpush1.bf16.msra.mxu0 %v518
    %547 = vmatprep.subr.bf16.mxu0 0
    %548 = vmatpush1.bf16.msra.mxu0 %v517
    %549 = vmatprep.subr.bf16.mxu0 0
    %550 = vmatpush2.bf16.msra.mxu0 0
    %551 = vmatprep.subr.bf16.mxu0 0
    %552 = vmatpush2.bf16.msra.mxu0 0
    %553 = vmatprep.subr.bf16.mxu0 0
    %554 = vmatpush2.bf16.msra.mxu0 0
    %555 = vmatprep.subr.bf16.mxu0 0
    %556 = vmatpush2.bf16.msra.mxu0 0
    %557 = vmatprep.subr.bf16.mxu0 0
    %558 = vmatpush2.bf16.msra.mxu0 0
    %559 = vmatprep.subr.bf16.mxu0 0
    %560 = vmatpush2.bf16.msra.mxu0 0
    %561 = vmatprep.subr.bf16.mxu0 0
    %562 = vmatpush2.bf16.msra.mxu0 0
    %563 = vmatprep.subr.bf16.mxu0 0
    %564 = vmatpush2.bf16.msra.mxu0 0
    %565 = vmatprep.mubr.bf16.mxu0 0
    %566 = vmatmul.mubr.bf16.gmra.mxu0 %v251
    %v567 = vpop.f32.mrf.mxu0
    %v568 = vadd.f32 %v480, %v567
    %v569 = vpop.f32.mrf.mxu0
    %v570 = vpop.f32.mrf.mxu0
    %v571 = vpop.f32.mrf.mxu0
    %572 = vdwg.mxu0
    %v573 = vld [vmem:[%s7] sm:$0x1]
    %v575 = vlaneseq
    %v576 = vshrl.u32 %v575, 7
    %v577 = vsub.s32 0, %v576
    %v578 = vrot.slane %v573, %v577
    %v580 = vadd.f32 %v568, %v578
    %582 = vrot.lane.b32.xlu0 %v580, 127
    %v583 = vpop.permute.xlu0 %582
    %v585 = vmax.f32 %v580, %v583
    %586 = vrot.lane.b32.xlu0 %v580, 1
    %v587 = vpop.permute.xlu0 %586
    %v589 = vsub.f32 %v580, %v587
    %v590 = vand.u32 2147483647, %v589
    %v591 = vsub.f32 0.0, %v590
    %v592 = vmul.f32 %v591, 1.442695
    %v593 = vpow.pop %v592
    %v594 = vadd.f32 %v593, 1.0
    %v595 = vlog2.pop %v594
    %v596 = vmul.f32 %v595, 0.6931472
    %598 = vrot.lane.b32.xlu0 %v596, 127
    %v599 = vpop.permute.xlu0 %598
    %v601 = vadd.f32 %v585, %v599
    %603 = vset.pattern.permute.xlu0 0
    %604 = vperm.xlu0 %603, %v601
    %v605 = vpop.permute.xlu0 %604
    %v607 = vsub.f32 %v580, %v605
    %vm608 = vcmask 64512
    %609 = vst.msk [vmem:[%s8] sm:$0xff] %vm608, %v607
    // Predicated region
    $region46: #{_forward.1} parent=1 // pred_check
      _
    $region47: #{_forward.1} parent=1 // pred_check_branch
      %611 = sbr.rel (0) target = $region49
    $region48: #{_forward.1} parent=1 // pred_region
      _
    $region49: #{_forward.1} parent=1 // pred_fallthru
      _
    // Predicated region
    $region50: #{_forward.1} parent=1 // pred_check
      _
    $region51: #{_forward.1} parent=1 // pred_check_branch
      %613 = sbr.rel (0) target = $region53
    $region52: #{_forward.1} parent=1 // pred_region
      _
    $region53: #{_forward.1} parent=1 // pred_fallthru
      _
    %614 = vsyncpa [#allocation3], 1
    %615 = vsyncpa [#allocation5], 1

</llo_original>
